<compile_context>
chip_gen: v7x
topology: tpu7x:2x2x1
jax: 0.10.0
libtpu: 0.0.40
codegen_flags: <defaults>
</compile_context>

<pallas_src>
import math

import jax
import jax.numpy as jnp
from jax.experimental import pallas as pl
from jax.experimental.pallas import tpu as pltpu

# ----------------------------- model dims ---------------------------------
B = 2          # batch
D_IN = 32      # input_size   (l1 is Linear(input_size, input_size) -> 32x32)
D_HID = 64     # hidden_size
D_OUT = 4      # output_size
LANE = 128     # lane-dense padded width of the packed slab / output
SUB = 8        # sublane granularity for batch-row padding


def _head_kernel(x_ref, w_ref, b_ref, o_ref):
    x = x_ref[...]                                                # (R, D_IN) f32

    # l1 + ReLU   (static sub-views of the packed weight/bias slabs)
    h = jnp.dot(x, w_ref[0:D_IN, 0:D_IN],
                preferred_element_type=jnp.float32) + b_ref[0:1, 0:D_IN]
    h = jnp.maximum(h, 0.0)

    # Dropout(p=0.1): inference/eval mode -> identity.
    # TODO(synk): training-mode dropout would need pltpu.prng_seed/prng_random_bits masking.

    # l2 + ReLU
    h = jnp.dot(h, w_ref[D_IN:2 * D_IN, 0:D_HID],
                preferred_element_type=jnp.float32) + b_ref[1:2, 0:D_HID]
    h = jnp.maximum(h, 0.0)

    # l3 (pre-padded to 128 output lanes) + sigmoid via a single EUP tanh:
    # sigmoid(z) == 0.5 * (tanh(z/2) + 1)  (exact identity, no VPU divide)
    z = jnp.dot(h, w_ref[2 * D_IN:2 * D_IN + D_HID, 0:LANE],
                preferred_element_type=jnp.float32) + b_ref[2:3, 0:LANE]
    o_ref[...] = 0.5 * (jnp.tanh(0.5 * z) + 1.0)                  # (R, 128) unmasked store


def classification_head_forward(x, params):
    """x: float32 [b, D_IN] -> sigmoid probabilities float32 [b, D_OUT]."""
    b = x.shape[0]
    rows = max(SUB, ((b + SUB - 1) // SUB) * SUB)                 # sublane-padded batch
    xp = jnp.zeros((rows, D_IN), jnp.float32).at[:b, :].set(x)

    vmem = pl.BlockSpec(memory_space=pltpu.MemorySpace.VMEM)
    cost = pl.CostEstimate(
        flops=2 * rows * (D_IN * D_IN + D_IN * D_HID + D_HID * LANE),
        transcendentals=rows * LANE,
        bytes_accessed=4 * (rows * D_IN + LANE * LANE + SUB * LANE + rows * LANE),
    )

    out = pl.pallas_call(
        _head_kernel,
        out_shape=jax.ShapeDtypeStruct((rows, LANE), jnp.float32),
        in_specs=[vmem, vmem, vmem],
        out_specs=vmem,
        cost_estimate=cost,
    )(xp, params["w_packed"], params["b_packed"])
    # NOTE: ideally the consumer takes the padded slab directly; slice here to
    # match the reference module's output contract.
    return out[:b, :D_OUT]


def init_params(key):
    ks = jax.random.split(key, 6)

    def lin_w(k, fan_in, fan_out):
        bound = 1.0 / math.sqrt(fan_in)
        return jax.random.uniform(k, (fan_in, fan_out), jnp.float32, -bound, bound)

    def lin_b(k, fan_in, fan_out):
        bound = 1.0 / math.sqrt(fan_in)
        return jax.random.uniform(k, (fan_out,), jnp.float32, -bound, bound)

    w1 = lin_w(ks[0], D_IN, D_IN)
    w2 = lin_w(ks[1], D_IN, D_HID)
    w3 = lin_w(ks[2], D_HID, D_OUT)
    b1 = lin_b(ks[3], D_IN, D_IN)
    b2 = lin_b(ks[4], D_IN, D_HID)
    b3 = lin_b(ks[5], D_HID, D_OUT)

    # One-time packing (free weight fold, not a runtime op):
    #   rows   0: 32 -> w1 (32x32),  rows 32: 64 -> w2 (32x64),  rows 64:128 -> w3 (64x128-padded)
    w_packed = jnp.zeros((LANE, LANE), jnp.float32)
    w_packed = w_packed.at[0:D_IN, 0:D_IN].set(w1)
    w_packed = w_packed.at[D_IN:2 * D_IN, 0:D_HID].set(w2)
    w_packed = w_packed.at[2 * D_IN:2 * D_IN + D_HID, 0:D_OUT].set(w3)

    b_packed = jnp.zeros((SUB, LANE), jnp.float32)
    b_packed = b_packed.at[0, 0:D_IN].set(b1)
    b_packed = b_packed.at[1, 0:D_HID].set(b2)
    b_packed = b_packed.at[2, 0:D_OUT].set(b3)

    return {"w_packed": w_packed, "b_packed": b_packed}


if __name__ == "__main__":
    key = jax.random.PRNGKey(0)
    pkey, xkey = jax.random.split(key)
    params = init_params(pkey)
    x = jax.random.normal(xkey, (B, D_IN), dtype=jnp.float32)

    forward = jax.jit(classification_head_forward)
    probs = jax.block_until_ready(forward(x, params))

    assert probs.shape == (B, D_OUT) and probs.dtype == jnp.float32
    assert bool(jnp.all((probs >= 0.0) & (probs <= 1.0)))          # sigmoid range
    print("KERNEL_OK")
</pallas_src>

<mosaic_0001>
module attributes {stable_mosaic.version = 11 : i64} {
  func.func @_head_kernel(%arg0: memref<8x32xf32, #tpu.memory_space<vmem>>, %arg1: memref<128x128xf32, #tpu.memory_space<vmem>>, %arg2: memref<8x128xf32, #tpu.memory_space<vmem>>, %arg3: memref<8x128xf32, #tpu.memory_space<vmem>>) attributes {dimension_semantics = [], scalar_prefetch = 0 : i64, scratch_operands = 0 : i64, tpu.core_type = #tpu.core_type<tc>} {
    %c0 = arith.constant 0 : index
    %c0_0 = arith.constant 0 : index
    %0 = vector.load %arg0[%c0, %c0_0] : memref<8x32xf32, #tpu.memory_space<vmem>>, vector<8x32xf32>
    %c0_1 = arith.constant 0 : index
    %c0_2 = arith.constant 0 : index
    %1 = vector.load %arg1[%c0_1, %c0_2] : memref<128x128xf32, #tpu.memory_space<vmem>>, vector<32x32xf32>
    %cst = arith.constant dense<0.000000e+00> : vector<8x32xf32>
    %2 = tpu.matmul %0, %1, %cst {dimension_numbers = #tpu.dot_dimension_numbers<[1], [0], [0], [1], [0, 0, 1, 1], [], []>} : vector<8x32xf32>, vector<32x32xf32>, vector<8x32xf32> -> vector<8x32xf32>
    %c0_3 = arith.constant 0 : index
    %c0_4 = arith.constant 0 : index
    %3 = vector.load %arg2[%c0_3, %c0_4] : memref<8x128xf32, #tpu.memory_space<vmem>>, vector<1x32xf32>
    %4 = vector.broadcast %3 : vector<1x32xf32> to vector<8x32xf32>
    %5 = arith.addf %2, %4 : vector<8x32xf32>
    %cst_5 = arith.constant 0.000000e+00 : f32
    %6 = vector.broadcast %cst_5 : f32 to vector<8x32xf32>
    %7 = arith.maximumf %5, %6 : vector<8x32xf32>
    %c32 = arith.constant 32 : index
    %c0_6 = arith.constant 0 : index
    %8 = vector.load %arg1[%c32, %c0_6] : memref<128x128xf32, #tpu.memory_space<vmem>>, vector<32x64xf32>
    %cst_7 = arith.constant dense<0.000000e+00> : vector<8x64xf32>
    %9 = tpu.matmul %7, %8, %cst_7 {dimension_numbers = #tpu.dot_dimension_numbers<[1], [0], [0], [1], [0, 0, 1, 1], [], []>} : vector<8x32xf32>, vector<32x64xf32>, vector<8x64xf32> -> vector<8x64xf32>
    %c1 = arith.constant 1 : index
    %c0_8 = arith.constant 0 : index
    %10 = vector.load %arg2[%c1, %c0_8] : memref<8x128xf32, #tpu.memory_space<vmem>>, vector<1x64xf32>
    %11 = vector.broadcast %10 : vector<1x64xf32> to vector<8x64xf32>
    %12 = arith.addf %9, %11 : vector<8x64xf32>
    %cst_9 = arith.constant 0.000000e+00 : f32
    %13 = vector.broadcast %cst_9 : f32 to vector<8x64xf32>
    %14 = arith.maximumf %12, %13 : vector<8x64xf32>
    %c64 = arith.constant 64 : index
    %c0_10 = arith.constant 0 : index
    %15 = vector.load %arg1[%c64, %c0_10] : memref<128x128xf32, #tpu.memory_space<vmem>>, vector<64x128xf32>
    %cst_11 = arith.constant dense<0.000000e+00> : vector<8x128xf32>
    %16 = tpu.matmul %14, %15, %cst_11 {dimension_numbers = #tpu.dot_dimension_numbers<[1], [0], [0], [1], [0, 0, 1, 1], [], []>} : vector<8x64xf32>, vector<64x128xf32>, vector<8x128xf32> -> vector<8x128xf32>
    %c2 = arith.constant 2 : index
    %c0_12 = arith.constant 0 : index
    %17 = vector.load %arg2[%c2, %c0_12] : memref<8x128xf32, #tpu.memory_space<vmem>>, vector<1x128xf32>
    %18 = vector.broadcast %17 : vector<1x128xf32> to vector<8x128xf32>
    %19 = arith.addf %16, %18 : vector<8x128xf32>
    %cst_13 = arith.constant 5.000000e-01 : f32
    %20 = vector.broadcast %cst_13 : f32 to vector<8x128xf32>
    %21 = arith.mulf %20, %19 : vector<8x128xf32>
    %22 = math.tanh %21 : vector<8x128xf32>
    %cst_14 = arith.constant 1.000000e+00 : f32
    %23 = vector.broadcast %cst_14 : f32 to vector<8x128xf32>
    %24 = arith.addf %22, %23 : vector<8x128xf32>
    %cst_15 = arith.constant 5.000000e-01 : f32
    %25 = vector.broadcast %cst_15 : f32 to vector<8x128xf32>
    %26 = arith.mulf %25, %24 : vector<8x128xf32>
    %c0_16 = arith.constant 0 : index
    %c0_17 = arith.constant 0 : index
    %27 = vector.load %arg3[%c0_16, %c0_17] : memref<8x128xf32, #tpu.memory_space<vmem>>, vector<8x128xf32>
    tpu.vector_store %arg3[%c0_16, %c0_17], %26 {strides = array<i32>} : memref<8x128xf32, #tpu.memory_space<vmem>>, vector<8x128xf32>,
    return
  }
}

</mosaic_0001>

<llo_original>
// kernel: classification_head_forward.1
$region0: #{classification_head_forward.1}
  #allocation0 [shape = 'u32[]', space=smem, size = 0x4, offset = 0x4, fixed_abs, tag = 'smem constant byte address 0x4 - core index']
  #allocation1 [shape = 'u32[144,128]{1,0:T(1,128)}', space=vmem, size = 0x12000, scoped, tag = 'internal scratch']
  %s0 = inlined_call_operand.vmem [shape: f32[8,32], index: 0, kind: input, shape index: {}]
  %s1 = inlined_call_operand.hbm [shape: f32[128,128], index: 1, kind: input, shape index: {}]
  %s2 = inlined_call_operand.vmem [shape: f32[8,128], index: 2, kind: input, shape index: {}]
  %s3 = inlined_call_operand.vmem [shape: f32[8,128], index: 3, kind: output, shape index: {}]
  %s4 = sld [smem:[#allocation0]]
  $region26: #{classification_head_forward.1} parent=0
    _
  %s6 = ssub.s32 1, %s4
  %s7 = scalar_select 0, %s6, %s4
  $region1: #{classification_head_forward.1} parent=0
    #allocation2 [shape = 'u8[65536]{0}', space=vmem, size = 0x10000, scoped, tag = 'input window, operand 1, single buffered']
    #allocation3 [shape = 's32[1]{0}', space=sflag, size = 0x4, scoped, tag = 'scoped memory for classification_head_forward.1']
    %8 = vsyncpa [#allocation3], 0
    // Predicated region
    $region2: #{classification_head_forward.1} parent=1 // pred_check
      _
    $region3: #{classification_head_forward.1} parent=1 // pred_check_branch
      %10 = sbr.rel (0) target = $region5
    $region4: #{classification_head_forward.1} parent=1 // pred_region
      _
    $region5: #{classification_head_forward.1} parent=1 // pred_fallthru
      _
    // Predicated region
    $region6: #{classification_head_forward.1} parent=1 // pred_check
      _
    $region7: #{classification_head_forward.1} parent=1 // pred_check_branch
      %12 = sbr.rel (0) target = $region9
    $region8: #{classification_head_forward.1} parent=1 // pred_region
      %s14 = ssub.s32 2048, 2048
      %15 = vsyncadd [#allocation3], %s14
      %s16 = sshll.u32 [#allocation2], 4
      %s17 = int_to_ptr.vmem [resolvable:$true] %s16
      %22 = dma.hbm_to_vmem [thread:$0]  %s1, 2048, %s17, [#allocation3], 128, 128, 8
    $region9: #{classification_head_forward.1} parent=1 // pred_fallthru
      _
    // Predicated region
    $region10: #{classification_head_forward.1} parent=1 // pred_check
      _
    $region11: #{classification_head_forward.1} parent=1 // pred_check_branch
      %24 = sbr.rel (0) target = $region13
    $region12: #{classification_head_forward.1} parent=1 // pred_region
      _
    $region13: #{classification_head_forward.1} parent=1 // pred_fallthru
      _
    // Predicated region
    $region14: #{classification_head_forward.1} parent=1 // pred_check
      _
    $region15: #{classification_head_forward.1} parent=1 // pred_check_branch
      %26 = sbr.rel (0) target = $region17
    $region16: #{classification_head_forward.1} parent=1 // pred_region
      %27 = dma.done [#allocation3], 2048
    $region17: #{classification_head_forward.1} parent=1 // pred_fallthru
      _
    %v28 = vld [vmem:[%s0] sm:$0xff]
    %v29 = vld [vmem:[#allocation2] sm:$0xff]
    %v30 = vld [vmem:[#allocation2 + $0x8] sm:$0xff]
    %v31 = vld [vmem:[#allocation2 + $0x10] sm:$0xff]
    %v32 = vld [vmem:[#allocation2 + $0x18] sm:$0xff]
    %v33 = vld [vmem:[%s2] sm:$0x1]
    %v34 = vlaneseq
    %v35 = vshrl.u32 %v34, 7
    %v36 = vsub.s32 0, %v35
    %v37 = vrot.slane %v33, %v36
    %vm38 = vcmask 261120
    %v40 = vsel %vm38, %v28, 0
    %42 = vmatprep.subr.mxu0 0.0
    %43 = vmatpush1.msra.mxu0 %v29
    %44 = vmatprep.subr.mxu0 0.0
    %45 = vmatpush1.msra.mxu0 %v30
    %46 = vmatprep.subr.mxu0 0.0
    %47 = vmatpush1.msra.mxu0 %v31
    %48 = vmatprep.subr.mxu0 0.0
    %49 = vmatpush1.msra.mxu0 %v32
    %50 = vmatprep.subr.mxu0 0.0
    %51 = vmatpush1.msra.mxu0 0.0
    %52 = vmatprep.subr.mxu0 0.0
    %53 = vmatpush1.msra.mxu0 0.0
    %54 = vmatprep.subr.mxu0 0.0
    %55 = vmatpush1.msra.mxu0 0.0
    %56 = vmatprep.subr.mxu0 0.0
    %57 = vmatpush1.msra.mxu0 0.0
    %58 = vmatprep.subr.mxu0 0.0
    %59 = vmatpush1.msra.mxu0 0.0
    %60 = vmatprep.subr.mxu0 0.0
    %61 = vmatpush1.msra.mxu0 0.0
    %62 = vmatprep.subr.mxu0 0.0
    %63 = vmatpush1.msra.mxu0 0.0
    %64 = vmatprep.subr.mxu0 0.0
    %65 = vmatpush1.msra.mxu0 0.0
    %66 = vmatprep.subr.mxu0 0.0
    %67 = vmatpush1.msra.mxu0 0.0
    %68 = vmatprep.subr.mxu0 0.0
    %69 = vmatpush1.msra.mxu0 0.0
    %70 = vmatprep.subr.mxu0 0.0
    %71 = vmatpush1.msra.mxu0 0.0
    %72 = vmatprep.subr.mxu0 0.0
    %73 = vmatpush1.msra.mxu0 0.0
    %74 = vmatprep.subr.mxu0 0.0
    %75 = vmatpush1.msra.mxu0 0.0
    %76 = vmatprep.subr.mxu0 0.0
    %77 = vmatpush1.msra.mxu0 0.0
    %78 = vmatprep.subr.mxu0 0.0
    %79 = vmatpush1.msra.mxu0 0.0
    %80 = vmatprep.subr.mxu0 0.0
    %81 = vmatpush1.msra.mxu0 0.0
    %82 = vmatprep.subr.mxu0 0.0
    %83 = vmatpush1.msra.mxu0 0.0
    %84 = vmatprep.subr.mxu0 0.0
    %85 = vmatpush1.msra.mxu0 0.0
    %86 = vmatprep.subr.mxu0 0.0
    %87 = vmatpush1.msra.mxu0 0.0
    %88 = vmatprep.subr.mxu0 0.0
    %89 = vmatpush1.msra.mxu0 0.0
    %90 = vmatprep.subr.mxu0 0.0
    %91 = vmatpush1.msra.mxu0 0.0
    %92 = vmatprep.subr.mxu0 0.0
    %93 = vmatpush1.msra.mxu0 0.0
    %94 = vmatprep.subr.mxu0 0.0
    %95 = vmatpush1.msra.mxu0 0.0
    %96 = vmatprep.subr.mxu0 0.0
    %97 = vmatpush1.msra.mxu0 0.0
    %98 = vmatprep.subr.mxu0 0.0
    %99 = vmatpush1.msra.mxu0 0.0
    %100 = vmatprep.subr.mxu0 0.0
    %101 = vmatpush1.msra.mxu0 0.0
    %102 = vmatprep.subr.mxu0 0.0
    %103 = vmatpush1.msra.mxu0 0.0
    %104 = vmatprep.subr.mxu0 0.0
    %105 = vmatpush1.msra.mxu0 0.0
    %106 = vmatprep.mubr.f32.mxu0 0.0
    %107 = vmatmul.mubr.f32.gmra.mrb[0].mxu0 %v40
    %v108 = vpop.f32.mrb[0].mxu0
    %v109 = vadd.f32 %v37, %v108
    %v110 = vpop.f32.mrb[0].mxu0
    %111 = vdwg.mxu0
    %v112 = vmax.f32 %v109, 0.0
    %v113 = vld [vmem:[#allocation2 + $0x20] sm:$0xff]
    %v114 = vld [vmem:[#allocation2 + $0x28] sm:$0xff]
    %v115 = vld [vmem:[#allocation2 + $0x30] sm:$0xff]
    %v116 = vld [vmem:[#allocation2 + $0x38] sm:$0xff]
    %v117 = vld [vmem:[%s2 + $0x1] sm:$0x1]
    %v118 = vlaneseq
    %v119 = vshrl.u32 %v118, 7
    %v120 = vsub.s32 0, %v119
    %v121 = vrot.slane %v117, %v120
    %v123 = vsel %vm38, %v112, 0
    %125 = vmatprep.subr.mxu0 0.0
    %126 = vmatpush1.msra.mxu0 %v113
    %127 = vmatprep.subr.mxu0 0.0
    %128 = vmatpush1.msra.mxu0 %v114
    %129 = vmatprep.subr.mxu0 0.0
    %130 = vmatpush1.msra.mxu0 %v115
    %131 = vmatprep.subr.mxu0 0.0
    %132 = vmatpush1.msra.mxu0 %v116
    %133 = vmatprep.subr.mxu0 0.0
    %134 = vmatpush1.msra.mxu0 0.0
    %135 = vmatprep.subr.mxu0 0.0
    %136 = vmatpush1.msra.mxu0 0.0
    %137 = vmatprep.subr.mxu0 0.0
    %138 = vmatpush1.msra.mxu0 0.0
    %139 = vmatprep.subr.mxu0 0.0
    %140 = vmatpush1.msra.mxu0 0.0
    %141 = vmatprep.subr.mxu0 0.0
    %142 = vmatpush1.msra.mxu0 0.0
    %143 = vmatprep.subr.mxu0 0.0
    %144 = vmatpush1.msra.mxu0 0.0
    %145 = vmatprep.subr.mxu0 0.0
    %146 = vmatpush1.msra.mxu0 0.0
    %147 = vmatprep.subr.mxu0 0.0
    %148 = vmatpush1.msra.mxu0 0.0
    %149 = vmatprep.subr.mxu0 0.0
    %150 = vmatpush1.msra.mxu0 0.0
    %151 = vmatprep.subr.mxu0 0.0
    %152 = vmatpush1.msra.mxu0 0.0
    %153 = vmatprep.subr.mxu0 0.0
    %154 = vmatpush1.msra.mxu0 0.0
    %155 = vmatprep.subr.mxu0 0.0
    %156 = vmatpush1.msra.mxu0 0.0
    %157 = vmatprep.subr.mxu0 0.0
    %158 = vmatpush1.msra.mxu0 0.0
    %159 = vmatprep.subr.mxu0 0.0
    %160 = vmatpush1.msra.mxu0 0.0
    %161 = vmatprep.subr.mxu0 0.0
    %162 = vmatpush1.msra.mxu0 0.0
    %163 = vmatprep.subr.mxu0 0.0
    %164 = vmatpush1.msra.mxu0 0.0
    %165 = vmatprep.subr.mxu0 0.0
    %166 = vmatpush1.msra.mxu0 0.0
    %167 = vmatprep.subr.mxu0 0.0
    %168 = vmatpush1.msra.mxu0 0.0
    %169 = vmatprep.subr.mxu0 0.0
    %170 = vmatpush1.msra.mxu0 0.0
    %171 = vmatprep.subr.mxu0 0.0
    %172 = vmatpush1.msra.mxu0 0.0
    %173 = vmatprep.subr.mxu0 0.0
    %174 = vmatpush1.msra.mxu0 0.0
    %175 = vmatprep.subr.mxu0 0.0
    %176 = vmatpush1.msra.mxu0 0.0
    %177 = vmatprep.subr.mxu0 0.0
    %178 = vmatpush1.msra.mxu0 0.0
    %179 = vmatprep.subr.mxu0 0.0
    %180 = vmatpush1.msra.mxu0 0.0
    %181 = vmatprep.subr.mxu0 0.0
    %182 = vmatpush1.msra.mxu0 0.0
    %183 = vmatprep.subr.mxu0 0.0
    %184 = vmatpush1.msra.mxu0 0.0
    %185 = vmatprep.subr.mxu0 0.0
    %186 = vmatpush1.msra.mxu0 0.0
    %187 = vmatprep.subr.mxu0 0.0
    %188 = vmatpush1.msra.mxu0 0.0
    %189 = vmatprep.mubr.f32.mxu0 0.0
    %190 = vmatmul.mubr.f32.gmra.mrb[0].mxu0 %v123
    %v191 = vpop.f32.mrb[0].mxu0
    %v192 = vadd.f32 %v121, %v191
    %v193 = vpop.f32.mrb[0].mxu0
    %194 = vdwg.mxu0
    %v195 = vmax.f32 %v192, 0.0
    %v196 = vld [vmem:[#allocation2 + $0x40] sm:$0xff]
    %v197 = vld [vmem:[#allocation2 + $0x48] sm:$0xff]
    %v198 = vld [vmem:[#allocation2 + $0x50] sm:$0xff]
    %v199 = vld [vmem:[#allocation2 + $0x58] sm:$0xff]
    %v200 = vld [vmem:[#allocation2 + $0x60] sm:$0xff]
    %v201 = vld [vmem:[#allocation2 + $0x68] sm:$0xff]
    %v202 = vld [vmem:[#allocation2 + $0x70] sm:$0xff]
    %v203 = vld [vmem:[#allocation2 + $0x78] sm:$0xff]
    %v204 = vld [vmem:[%s2 + $0x2] sm:$0x1]
    %v205 = vlaneseq
    %v206 = vshrl.u32 %v205, 7
    %v207 = vsub.s32 0, %v206
    %v208 = vrot.slane %v204, %v207
    %vm209 = vcmask 523264
    %v211 = vsel %vm209, %v195, 0
    %213 = vmatprep.subr.mxu0 0.0
    %214 = vmatpush1.msra.mxu0 %v196
    %215 = vmatprep.subr.mxu0 0.0
    %216 = vmatpush1.msra.mxu0 %v197
    %217 = vmatprep.subr.mxu0 0.0
    %218 = vmatpush1.msra.mxu0 %v198
    %219 = vmatprep.subr.mxu0 0.0
    %220 = vmatpush1.msra.mxu0 %v199
    %221 = vmatprep.subr.mxu0 0.0
    %222 = vmatpush1.msra.mxu0 %v200
    %223 = vmatprep.subr.mxu0 0.0
    %224 = vmatpush1.msra.mxu0 %v201
    %225 = vmatprep.subr.mxu0 0.0
    %226 = vmatpush1.msra.mxu0 %v202
    %227 = vmatprep.subr.mxu0 0.0
    %228 = vmatpush1.msra.mxu0 %v203
    %229 = vmatprep.subr.mxu0 0.0
    %230 = vmatpush1.msra.mxu0 0.0
    %231 = vmatprep.subr.mxu0 0.0
    %232 = vmatpush1.msra.mxu0 0.0
    %233 = vmatprep.subr.mxu0 0.0
    %234 = vmatpush1.msra.mxu0 0.0
    %235 = vmatprep.subr.mxu0 0.0
    %236 = vmatpush1.msra.mxu0 0.0
    %237 = vmatprep.subr.mxu0 0.0
    %238 = vmatpush1.msra.mxu0 0.0
    %239 = vmatprep.subr.mxu0 0.0
    %240 = vmatpush1.msra.mxu0 0.0
    %241 = vmatprep.subr.mxu0 0.0
    %242 = vmatpush1.msra.mxu0 0.0
    %243 = vmatprep.subr.mxu0 0.0
    %244 = vmatpush1.msra.mxu0 0.0
    %245 = vmatprep.subr.mxu0 0.0
    %246 = vmatpush1.msra.mxu0 0.0
    %247 = vmatprep.subr.mxu0 0.0
    %248 = vmatpush1.msra.mxu0 0.0
    %249 = vmatprep.subr.mxu0 0.0
    %250 = vmatpush1.msra.mxu0 0.0
    %251 = vmatprep.subr.mxu0 0.0
    %252 = vmatpush1.msra.mxu0 0.0
    %253 = vmatprep.subr.mxu0 0.0
    %254 = vmatpush1.msra.mxu0 0.0
    %255 = vmatprep.subr.mxu0 0.0
    %256 = vmatpush1.msra.mxu0 0.0
    %257 = vmatprep.subr.mxu0 0.0
    %258 = vmatpush1.msra.mxu0 0.0
    %259 = vmatprep.subr.mxu0 0.0
    %260 = vmatpush1.msra.mxu0 0.0
    %261 = vmatprep.subr.mxu0 0.0
    %262 = vmatpush1.msra.mxu0 0.0
    %263 = vmatprep.subr.mxu0 0.0
    %264 = vmatpush1.msra.mxu0 0.0
    %265 = vmatprep.subr.mxu0 0.0
    %266 = vmatpush1.msra.mxu0 0.0
    %267 = vmatprep.subr.mxu0 0.0
    %268 = vmatpush1.msra.mxu0 0.0
    %269 = vmatprep.subr.mxu0 0.0
    %270 = vmatpush1.msra.mxu0 0.0
    %271 = vmatprep.subr.mxu0 0.0
    %272 = vmatpush1.msra.mxu0 0.0
    %273 = vmatprep.subr.mxu0 0.0
    %274 = vmatpush1.msra.mxu0 0.0
    %275 = vmatprep.subr.mxu0 0.0
    %276 = vmatpush1.msra.mxu0 0.0
    %277 = vmatprep.mubr.f32.mxu0 0.0
    %278 = vmatmul.mubr.f32.gmra.mrb[0].mxu0 %v211
    %v279 = vpop.f32.mrb[0].mxu0
    %v280 = vadd.f32 %v208, %v279
    %v281 = vpop.f32.mrb[0].mxu0
    %282 = vdwg.mxu0
    %v283 = vmul.f32 %v280, 0.5
    %v284 = vtanh.pop %v283
    %v285 = vadd.f32 %v284, 1.0
    %v286 = vmul.f32 %v285, 0.5
    %287 = vst [vmem:[%s3] sm:$0xff] %v286
    // Predicated region
    $region18: #{classification_head_forward.1} parent=1 // pred_check
      _
    $region19: #{classification_head_forward.1} parent=1 // pred_check_branch
      %289 = sbr.rel (0) target = $region21
    $region20: #{classification_head_forward.1} parent=1 // pred_region
      _
    $region21: #{classification_head_forward.1} parent=1 // pred_fallthru
      _
    // Predicated region
    $region22: #{classification_head_forward.1} parent=1 // pred_check
      _
    $region23: #{classification_head_forward.1} parent=1 // pred_check_branch
      %291 = sbr.rel (0) target = $region25
    $region24: #{classification_head_forward.1} parent=1 // pred_region
      _
    $region25: #{classification_head_forward.1} parent=1 // pred_fallthru
      _
    %292 = vsyncpa [#allocation3], 1

</llo_original>
